<compile_context>
chip_gen: v5e
topology: v5e:2x2
jax: 0.10.0
libtpu: 0.0.40
codegen_flags: <defaults>
</compile_context>

<pallas_src>
import jax
import jax.numpy as jnp
from jax.experimental import pallas as pl
from jax.experimental.pallas import tpu as pltpu

IN_CH = 16
HID_CH = 32
OUT_CH = 32
K_CH = 4                       # eigenvector channels folded into lanes (k*OUT_CH = 128)
LN_EPS = 1e-5

KIN = K_CH * IN_CH             # 64  packed input lanes
KH = K_CH * HID_CH             # 128 packed hidden/output lanes (== K_CH * OUT_CH)

# Row offsets inside the packed bf16 parameter slab.  All offsets/sizes are
# multiples of 16 so no ref slice straddles a bf16 (16,128) sublane tile.
_W1_OFF = 0                    # block-diag fc1        (KIN, KH)
_W2_OFF = _W1_OFF + KIN        # block-diag fc2        (KH, KH)
_W3_OFF = _W2_OFF + KH         # block-diag fc3 (+I)   (KH, KH)
_AVG_OFF = _W3_OFF + KH        # block-averaging       (KH, KH)
_VEC_OFF = _AVG_OFF + KH       # 7 bias/LN rows + pad  (16, KH)
_VEC_ROWS = 16
SLAB_ROWS = _VEC_OFF + _VEC_ROWS   # 464

MAX_ROW_TILE = 1024            # in-kernel rows double (sign branches) -> keep VMEM sane


def signed_mlp_kernel(x_ref, p_ref, o_ref):
    tile = x_ref.shape[0]
    x = x_ref[...]                                        # (tile, KIN), f32

    w1 = p_ref[_W1_OFF:_W1_OFF + KIN, :]                  # (KIN, KH) bf16
    w2 = p_ref[_W2_OFF:_W2_OFF + KH, :]                   # (KH, KH)  bf16
    w3 = p_ref[_W3_OFF:_W3_OFF + KH, :]                   # (KH, KH)  bf16, +I folded
    avg = p_ref[_AVG_OFF:_AVG_OFF + KH, :]                # (KH, KH)  bf16 (1/32 exact)
    vecs = p_ref[_VEC_OFF:_VEC_OFF + _VEC_ROWS, :].astype(jnp.float32)
    b1, g1, be1 = vecs[0:1], vecs[1:2], vecs[2:3]
    b2, g2, be2 = vecs[3:4], vecs[4:5], vecs[5:6]
    b3 = vecs[6:7]

    def block_layernorm(h, gamma, beta):
        # Per-32-lane-block LayerNorm via MXU matmuls: `avg` averages each
        # 32-lane block and broadcasts the result back to its lanes (no XLU
        # cross-lane reduce, no reshape).  Elementwise math stays f32.
        mean = jnp.dot(h.astype(jnp.bfloat16), avg, preferred_element_type=jnp.float32)
        c = h - mean
        var = jnp.dot((c * c).astype(jnp.bfloat16), avg,
                      preferred_element_type=jnp.float32)
        return c * jax.lax.rsqrt(var + LN_EPS) * gamma + beta

    # ----- layer 1: fc -> relu -> ln   (residual skipped: 16-ch in vs 32-ch out)
    # Sign branches share the first matmul: (-x) @ w1 == -(x @ w1).
    m1 = jnp.dot(x.astype(jnp.bfloat16), w1, preferred_element_type=jnp.float32)
    h = jnp.concatenate([m1 + b1, b1 - m1], axis=0)       # (2*tile, KH): [+x ; -x]
    h = jnp.maximum(h, 0.0)
    h = block_layernorm(h, g1, be1)
    x_prev = h                                            # dropout: eval -> identity

    # ----- layer 2: fc -> relu -> ln -> residual
    h = jnp.dot(h.astype(jnp.bfloat16), w2, preferred_element_type=jnp.float32) + b2
    h = jnp.maximum(h, 0.0)
    h = block_layernorm(h, g2, be2)
    h = h + x_prev

    # ----- final layer: fc (+ residual folded into w3 as +I at pack time)
    out = jnp.dot(h.astype(jnp.bfloat16), w3, preferred_element_type=jnp.float32) + b3
    # Sign-invariant sum of the two branches, single lane-dense (128) store.
    o_ref[...] = (out[:tile] + out[tile:]).astype(o_ref.dtype)


def pack_params(params):
    """Pack the per-channel MLP params into one [SLAB_ROWS, KH] bf16 slab."""
    w1, b1, g1, be1, w2, b2, g2, be2, w3, b3 = params
    eye_k = jnp.eye(K_CH, dtype=jnp.float32)
    w1_bd = jnp.kron(eye_k, w1)                                          # (KIN, KH)
    w2_bd = jnp.kron(eye_k, w2)                                          # (KH, KH)
    # Final residual folded into the last weight: h @ (W3 + I) + b3 == h@W3 + b3 + h.
    w3_bd = jnp.kron(eye_k, w3) + jnp.eye(KH, dtype=jnp.float32)         # (KH, KH)
    avg = jnp.kron(eye_k, jnp.full((HID_CH, HID_CH), 1.0 / HID_CH, jnp.float32))
    vec_rows = [jnp.tile(v, (1, K_CH)) for v in (b1, g1, be1, b2, g2, be2, b3)]
    vec_rows.append(jnp.zeros((_VEC_ROWS - 7, KH), jnp.float32))         # pad to 16 rows
    slab = jnp.concatenate([w1_bd, w2_bd, w3_bd, avg,
                            jnp.concatenate(vec_rows, axis=0)], axis=0)
    assert slab.shape == (SLAB_ROWS, KH)
    return slab.astype(jnp.bfloat16)


def signed_mlp_forward(x_packed, param_slab):
    """Sign-invariant update-net: per-channel MLP(x) + MLP(-x), k channels fused.

    x_packed:   [N, K_CH*IN_CH]  channel-major per node (a pure reshape of the
                producer's [N, K_CH, IN_CH] layout -> no HBM transpose needed).
    returns:    [N, K_CH*OUT_CH] exactly the layout the downstream `rho` consumes.
    """
    n, kin = x_packed.shape
    assert kin == KIN

    tile = n if n <= MAX_ROW_TILE else MAX_ROW_TILE
    grid = (pl.cdiv(n, tile),)                            # arbitrary N supported

    # 3 fc matmuls (+ shared fc1) + 4 LN matmuls, both sign branches.
    flops = n * 2 * KIN * KH + 2 * n * 12 * KH * KH
    bytes_accessed = 4 * n * (KIN + KH) + 2 * SLAB_ROWS * KH

    return pl.pallas_call(
        signed_mlp_kernel,
        out_shape=jax.ShapeDtypeStruct((n, KH), jnp.float32),
        grid=grid,
        in_specs=[
            pl.BlockSpec((tile, KIN), lambda i: (i, 0)),        # node-row tile
            pl.BlockSpec((SLAB_ROWS, KH), lambda i: (0, 0)),    # one packed param slab
        ],
        out_specs=pl.BlockSpec((tile, KH), lambda i: (i, 0)),   # lane-dense (128) output
        compiler_params=pltpu.CompilerParams(
            dimension_semantics=("parallel",),                  # >=2 steps at large N -> both v7x TCs
            vmem_limit_bytes=32 * 1024 * 1024),
        cost_estimate=pl.CostEstimate(
            flops=flops,
            transcendentals=4 * n * KH,
            bytes_accessed=bytes_accessed),
    )(x_packed, param_slab)


def mlp_reference(x_knc, params):
    """Plain-JAX f32 reference: the MLP applied independently to each channel."""
    w1, b1, g1, be1, w2, b2, g2, be2, w3, b3 = params

    def ln(h, gamma, beta):
        m = jnp.mean(h, axis=-1, keepdims=True)
        v = jnp.mean((h - m) ** 2, axis=-1, keepdims=True)
        return (h - m) * jax.lax.rsqrt(v + LN_EPS) * gamma + beta

    h = jnp.maximum(x_knc @ w1 + b1, 0.0)
    h = ln(h, g1, be1)
    x_prev = h
    h = jnp.maximum(h @ w2 + b2, 0.0)
    h = ln(h, g2, be2)
    h = h + x_prev
    x_prev = h
    out = h @ w3 + b3 + x_prev                           # [K, N, OUT]
    k, n, _ = x_knc.shape
    return jnp.transpose(out, (1, 0, 2)).reshape(n, k * OUT_CH)


def signed_mlp_reference(x_knc, params):
    return mlp_reference(x_knc, params) + mlp_reference(-x_knc, params)


def init_params(key):
    ks = jax.random.split(key, 10)

    def lin(kw, kb, cin, cout):
        bound = 1.0 / (cin ** 0.5)
        w = jax.random.uniform(kw, (cin, cout), jnp.float32, -bound, bound)
        b = jax.random.uniform(kb, (1, cout), jnp.float32, -bound, bound)
        return w, b

    w1, b1 = lin(ks[0], ks[1], IN_CH, HID_CH)
    w2, b2 = lin(ks[2], ks[3], HID_CH, HID_CH)
    w3, b3 = lin(ks[4], ks[5], HID_CH, OUT_CH)
    g1 = 1.0 + 0.1 * jax.random.normal(ks[6], (1, HID_CH), jnp.float32)
    be1 = 0.1 * jax.random.normal(ks[7], (1, HID_CH), jnp.float32)
    g2 = 1.0 + 0.1 * jax.random.normal(ks[8], (1, HID_CH), jnp.float32)
    be2 = 0.1 * jax.random.normal(ks[9], (1, HID_CH), jnp.float32)
    return (w1, b1, g1, be1, w2, b2, g2, be2, w3, b3)


if __name__ == "__main__":
    key = jax.random.PRNGKey(0)
    kx, kp = jax.random.split(key)
    n_nodes = 64

    # Producer-side layout [N, K, IN]: packing into lanes is a free reshape,
    # no standalone HBM transpose precedes the kernel launch.
    x_nkc = jax.random.normal(kx, (n_nodes, K_CH, IN_CH), jnp.float32)
    x_packed = x_nkc.reshape(n_nodes, KIN)

    params = init_params(kp)
    param_slab = pack_params(params)

    out = signed_mlp_forward(x_packed, param_slab)
    out = jax.block_until_ready(out)

    # Reference uses the per-channel [K, N, IN] view (reference-only shuffle).
    x_knc = jnp.transpose(x_nkc, (1, 0, 2))
    ref = signed_mlp_reference(x_knc, params)
    assert out.shape == (n_nodes, K_CH * OUT_CH)
    max_err = float(jnp.max(jnp.abs(out - ref)))
    # Tolerance reflects bf16 matmul operands on the MXU (accumulation in f32)
    # plus the block-diagonal / LN-by-matmul summation-order changes.
    assert jnp.allclose(out, ref, atol=5e-2, rtol=5e-2), (
        f"mismatch vs reference, max abs err {max_err}")

    # TODO(synk): training-mode dropout (F.dropout, p=0.5) is not implemented;
    # the module is run in eval mode where dropout is the identity.
    print("KERNEL_OK")
</pallas_src>

<mosaic_0001>
module attributes {stable_mosaic.version = 11 : i64} {
  func.func @signed_mlp_kernel(%arg0: i32, %arg1: memref<64x64xf32, #tpu.memory_space<vmem>>, %arg2: memref<464x128xbf16, #tpu.memory_space<vmem>>, %arg3: memref<64x128xf32, #tpu.memory_space<vmem>>) attributes {dimension_semantics = [#tpu.dimension_semantics<parallel>], iteration_bounds = array<i64: 1>, scalar_prefetch = 0 : i64, scratch_operands = 0 : i64, tpu.core_type = #tpu.core_type<tc>, window_params = [{transform_indices = @transform_0, window_bounds = array<i64: 64, 64>}, {pipeline_mode = #tpu.pipeline_mode<synchronous>, transform_indices = @transform_1, window_bounds = array<i64: 464, 128>}, {transform_indices = @transform_2, window_bounds = array<i64: 64, 128>}]} {
    %c0 = arith.constant 0 : index
    %c0_0 = arith.constant 0 : index
    %0 = vector.load %arg1[%c0, %c0_0] : memref<64x64xf32, #tpu.memory_space<vmem>>, vector<64x64xf32>
    %c0_1 = arith.constant 0 : index
    %c0_2 = arith.constant 0 : index
    %1 = vector.load %arg2[%c0_1, %c0_2] : memref<464x128xbf16, #tpu.memory_space<vmem>>, vector<64x128xbf16>
    %c64 = arith.constant 64 : index
    %c0_3 = arith.constant 0 : index
    %2 = vector.load %arg2[%c64, %c0_3] : memref<464x128xbf16, #tpu.memory_space<vmem>>, vector<128x128xbf16>
    %c192 = arith.constant 192 : index
    %c0_4 = arith.constant 0 : index
    %3 = vector.load %arg2[%c192, %c0_4] : memref<464x128xbf16, #tpu.memory_space<vmem>>, vector<128x128xbf16>
    %c320 = arith.constant 320 : index
    %c0_5 = arith.constant 0 : index
    %4 = vector.load %arg2[%c320, %c0_5] : memref<464x128xbf16, #tpu.memory_space<vmem>>, vector<128x128xbf16>
    %c448 = arith.constant 448 : index
    %c0_6 = arith.constant 0 : index
    %5 = vector.load %arg2[%c448, %c0_6] : memref<464x128xbf16, #tpu.memory_space<vmem>>, vector<16x128xbf16>
    %6 = arith.extf %5 : vector<16x128xbf16> to vector<16x128xf32>
    %7 = vector.extract_strided_slice %6 {offsets = [0, 0], sizes = [1, 128], strides = [1, 1]} : vector<16x128xf32> to vector<1x128xf32>
    %8 = vector.extract_strided_slice %6 {offsets = [1, 0], sizes = [1, 128], strides = [1, 1]} : vector<16x128xf32> to vector<1x128xf32>
    %9 = vector.extract_strided_slice %6 {offsets = [2, 0], sizes = [1, 128], strides = [1, 1]} : vector<16x128xf32> to vector<1x128xf32>
    %10 = vector.extract_strided_slice %6 {offsets = [3, 0], sizes = [1, 128], strides = [1, 1]} : vector<16x128xf32> to vector<1x128xf32>
    %11 = vector.extract_strided_slice %6 {offsets = [4, 0], sizes = [1, 128], strides = [1, 1]} : vector<16x128xf32> to vector<1x128xf32>
    %12 = vector.extract_strided_slice %6 {offsets = [5, 0], sizes = [1, 128], strides = [1, 1]} : vector<16x128xf32> to vector<1x128xf32>
    %13 = vector.extract_strided_slice %6 {offsets = [6, 0], sizes = [1, 128], strides = [1, 1]} : vector<16x128xf32> to vector<1x128xf32>
    %14 = arith.truncf %0 : vector<64x64xf32> to vector<64x64xbf16>
    %cst = arith.constant dense<0.000000e+00> : vector<64x128xf32>
    %15 = tpu.matmul %14, %1, %cst {dimension_numbers = #tpu.dot_dimension_numbers<[1], [0], [0], [1], [0, 0, 1, 1], [], []>} : vector<64x64xbf16>, vector<64x128xbf16>, vector<64x128xf32> -> vector<64x128xf32>
    %16 = vector.broadcast %7 : vector<1x128xf32> to vector<64x128xf32>
    %17 = arith.addf %15, %16 : vector<64x128xf32>
    %18 = vector.broadcast %7 : vector<1x128xf32> to vector<64x128xf32>
    %19 = arith.subf %18, %15 : vector<64x128xf32>
    %20 = tpu.concatenate %17, %19 in 0 : vector<64x128xf32>, vector<64x128xf32> -> vector<128x128xf32>
    %cst_7 = arith.constant 0.000000e+00 : f32
    %21 = vector.broadcast %cst_7 : f32 to vector<128x128xf32>
    %22 = arith.maximumf %20, %21 : vector<128x128xf32>
    %23 = arith.truncf %22 : vector<128x128xf32> to vector<128x128xbf16>
    %cst_8 = arith.constant dense<0.000000e+00> : vector<128x128xf32>
    %24 = tpu.matmul %23, %4, %cst_8 {dimension_numbers = #tpu.dot_dimension_numbers<[1], [0], [0], [1], [0, 0, 1, 1], [], []>} : vector<128x128xbf16>, vector<128x128xbf16>, vector<128x128xf32> -> vector<128x128xf32>
    %25 = arith.subf %22, %24 : vector<128x128xf32>
    %26 = arith.mulf %25, %25 : vector<128x128xf32>
    %27 = arith.truncf %26 : vector<128x128xf32> to vector<128x128xbf16>
    %cst_9 = arith.constant dense<0.000000e+00> : vector<128x128xf32>
    %28 = tpu.matmul %27, %4, %cst_9 {dimension_numbers = #tpu.dot_dimension_numbers<[1], [0], [0], [1], [0, 0, 1, 1], [], []>} : vector<128x128xbf16>, vector<128x128xbf16>, vector<128x128xf32> -> vector<128x128xf32>
    %cst_10 = arith.constant 9.99999974E-6 : f32
    %29 = vector.broadcast %cst_10 : f32 to vector<128x128xf32>
    %30 = arith.addf %28, %29 : vector<128x128xf32>
    %31 = math.rsqrt %30 : vector<128x128xf32>
    %32 = arith.mulf %25, %31 : vector<128x128xf32>
    %33 = vector.broadcast %8 : vector<1x128xf32> to vector<128x128xf32>
    %34 = arith.mulf %32, %33 : vector<128x128xf32>
    %35 = vector.broadcast %9 : vector<1x128xf32> to vector<128x128xf32>
    %36 = arith.addf %34, %35 : vector<128x128xf32>
    %37 = arith.truncf %36 : vector<128x128xf32> to vector<128x128xbf16>
    %cst_11 = arith.constant dense<0.000000e+00> : vector<128x128xf32>
    %38 = tpu.matmul %37, %2, %cst_11 {dimension_numbers = #tpu.dot_dimension_numbers<[1], [0], [0], [1], [0, 0, 1, 1], [], []>} : vector<128x128xbf16>, vector<128x128xbf16>, vector<128x128xf32> -> vector<128x128xf32>
    %39 = vector.broadcast %10 : vector<1x128xf32> to vector<128x128xf32>
    %40 = arith.addf %38, %39 : vector<128x128xf32>
    %cst_12 = arith.constant 0.000000e+00 : f32
    %41 = vector.broadcast %cst_12 : f32 to vector<128x128xf32>
    %42 = arith.maximumf %40, %41 : vector<128x128xf32>
    %43 = arith.truncf %42 : vector<128x128xf32> to vector<128x128xbf16>
    %cst_13 = arith.constant dense<0.000000e+00> : vector<128x128xf32>
    %44 = tpu.matmul %43, %4, %cst_13 {dimension_numbers = #tpu.dot_dimension_numbers<[1], [0], [0], [1], [0, 0, 1, 1], [], []>} : vector<128x128xbf16>, vector<128x128xbf16>, vector<128x128xf32> -> vector<128x128xf32>
    %45 = arith.subf %42, %44 : vector<128x128xf32>
    %46 = arith.mulf %45, %45 : vector<128x128xf32>
    %47 = arith.truncf %46 : vector<128x128xf32> to vector<128x128xbf16>
    %cst_14 = arith.constant dense<0.000000e+00> : vector<128x128xf32>
    %48 = tpu.matmul %47, %4, %cst_14 {dimension_numbers = #tpu.dot_dimension_numbers<[1], [0], [0], [1], [0, 0, 1, 1], [], []>} : vector<128x128xbf16>, vector<128x128xbf16>, vector<128x128xf32> -> vector<128x128xf32>
    %cst_15 = arith.constant 9.99999974E-6 : f32
    %49 = vector.broadcast %cst_15 : f32 to vector<128x128xf32>
    %50 = arith.addf %48, %49 : vector<128x128xf32>
    %51 = math.rsqrt %50 : vector<128x128xf32>
    %52 = arith.mulf %45, %51 : vector<128x128xf32>
    %53 = vector.broadcast %11 : vector<1x128xf32> to vector<128x128xf32>
    %54 = arith.mulf %52, %53 : vector<128x128xf32>
    %55 = vector.broadcast %12 : vector<1x128xf32> to vector<128x128xf32>
    %56 = arith.addf %54, %55 : vector<128x128xf32>
    %57 = arith.addf %56, %36 : vector<128x128xf32>
    %58 = arith.truncf %57 : vector<128x128xf32> to vector<128x128xbf16>
    %cst_16 = arith.constant dense<0.000000e+00> : vector<128x128xf32>
    %59 = tpu.matmul %58, %3, %cst_16 {dimension_numbers = #tpu.dot_dimension_numbers<[1], [0], [0], [1], [0, 0, 1, 1], [], []>} : vector<128x128xbf16>, vector<128x128xbf16>, vector<128x128xf32> -> vector<128x128xf32>
    %60 = vector.broadcast %13 : vector<1x128xf32> to vector<128x128xf32>
    %61 = arith.addf %59, %60 : vector<128x128xf32>
    %62 = vector.extract_strided_slice %61 {offsets = [0, 0], sizes = [64, 128], strides = [1, 1]} : vector<128x128xf32> to vector<64x128xf32>
    %63 = vector.extract_strided_slice %61 {offsets = [64, 0], sizes = [64, 128], strides = [1, 1]} : vector<128x128xf32> to vector<64x128xf32>
    %64 = arith.addf %62, %63 : vector<64x128xf32>
    %c0_17 = arith.constant 0 : index
    %c0_18 = arith.constant 0 : index
    %65 = vector.load %arg3[%c0_17, %c0_18] : memref<64x128xf32, #tpu.memory_space<vmem>>, vector<64x128xf32>
    tpu.vector_store %arg3[%c0_17, %c0_18], %64 {strides = array<i32>} : memref<64x128xf32, #tpu.memory_space<vmem>>, vector<64x128xf32>,
    return
  }
  func.func @transform_0(%arg0: i32) -> (i32, i32) {
    %c0_i32 = arith.constant 0 : i32
    %c0_i32_0 = arith.constant 0 : i32
    return %arg0, %c0_i32 : i32, i32
  }
  func.func @transform_1(%arg0: i32) -> (i32, i32) {
    %c0_i32 = arith.constant 0 : i32
    %c0_i32_0 = arith.constant 0 : i32
    %c0_i32_1 = arith.constant 0 : i32
    return %c0_i32, %c0_i32_0 : i32, i32
  }
  func.func @transform_2(%arg0: i32) -> (i32, i32) {
    %c0_i32 = arith.constant 0 : i32
    %c0_i32_0 = arith.constant 0 : i32
    return %arg0, %c0_i32 : i32, i32
  }
}

</mosaic_0001>

<llo_original>
// kernel: tpu_custom_call.1
$region0: #{tpu_custom_call.1}
  #allocation0 [shape = 'u32[]', space=smem, size = 0x4, offset = 0x4, fixed_abs, tag = 'smem constant byte address 0x4 - core index']
  #allocation1 [shape = 'u32[72,128]{1,0:T(1,128)}', space=vmem, size = 0x9000, scoped, tag = 'internal scratch']
  %s0 = inlined_call_operand.hbm [shape: f32[64,64], index: 0, kind: input, shape index: {}]
  %s1 = inlined_call_operand.hbm [shape: bf16[464,128], index: 1, kind: input, shape index: {}]
  %s2 = inlined_call_operand.hbm [shape: f32[64,128], index: 2, kind: output, shape index: {}]
  %s3 = sld [smem:[#allocation0]]
  $region26: #{tpu_custom_call.1} parent=0
    _
  %s5 = ssub.s32 1, %s3
  %s6 = scalar_select 0, %s5, %s3
  $region1: #{tpu_custom_call.1} parent=0
    #allocation2 [shape = 'u8[32768]{0}', space=vmem, size = 0x8000, scoped, tag = 'input window, operand 0, single buffered']
    #allocation3 [shape = 's32[1]{0}', space=sflag, size = 0x4, scoped, tag = 'scoped memory for tpu_custom_call.1']
    #allocation4 [shape = 's32[1]{0}', space=sflag, size = 0x4, scoped, tag = 'scoped memory for tpu_custom_call.1']
    #allocation5 [shape = 'u8[118784]{0}', space=vmem, size = 0x1d000, scoped, tag = 'input window, operand 1, single buffered']
    #allocation6 [shape = 's32[1]{0}', space=sflag, size = 0x4, scoped, tag = 'scoped memory for tpu_custom_call.1']
    #allocation7 [shape = 'u8[32768]{0}', space=vmem, size = 0x8000, scoped, tag = 'output window, operand 0, single buffered']
    %7 = vsyncpa [#allocation3], 0
    %8 = vsyncpa [#allocation6], 0
    %9 = vsyncpa [#allocation4], 0
    // Predicated region
    $region2: #{tpu_custom_call.1} parent=1 // pred_check
      _
    $region3: #{tpu_custom_call.1} parent=1 // pred_check_branch
      %11 = sbr.rel (0) target = $region5
    $region4: #{tpu_custom_call.1} parent=1 // pred_region
      %13 = vsyncadd [#allocation3], 0
      %s14 = sshll.u32 %s0, 4
      %s15 = int_to_ptr.hbm [resolvable:$true] %s14
      %s16 = sshll.u32 [#allocation2], 4
      %s17 = int_to_ptr.vmem [resolvable:$true] %s16
      %22 = dma.hbm_to_vmem [thread:$0]  %s15, 1024, %s17, [#allocation3], 128, 128, 8
    $region5: #{tpu_custom_call.1} parent=1 // pred_fallthru
      _
    // Predicated region
    $region6: #{tpu_custom_call.1} parent=1 // pred_check
      _
    $region7: #{tpu_custom_call.1} parent=1 // pred_check_branch
      %24 = sbr.rel (0) target = $region9
    $region8: #{tpu_custom_call.1} parent=1 // pred_region
      %26 = vsyncadd [#allocation6], 0
      %s27 = sshll.u32 %s1, 4
      %s28 = int_to_ptr.hbm [resolvable:$true] %s27
      %s29 = sshll.u32 [#allocation5], 4
      %s30 = int_to_ptr.vmem [resolvable:$true] %s29
      %35 = dma.hbm_to_vmem [thread:$0]  %s28, 3712, %s30, [#allocation6], 64, 64, 4
    $region9: #{tpu_custom_call.1} parent=1 // pred_fallthru
      _
    // Predicated region
    $region10: #{tpu_custom_call.1} parent=1 // pred_check
      _
    $region11: #{tpu_custom_call.1} parent=1 // pred_check_branch
      %37 = sbr.rel (0) target = $region13
    $region12: #{tpu_custom_call.1} parent=1 // pred_region
      %39 = dma.done [#allocation3], 1024
    $region13: #{tpu_custom_call.1} parent=1 // pred_fallthru
      _
    // Predicated region
    $region14: #{tpu_custom_call.1} parent=1 // pred_check
      _
    $region15: #{tpu_custom_call.1} parent=1 // pred_check_branch
      %41 = sbr.rel (0) target = $region17
    $region16: #{tpu_custom_call.1} parent=1 // pred_region
      %43 = dma.done [#allocation6], 3712
    $region17: #{tpu_custom_call.1} parent=1 // pred_fallthru
      _
    %v45 = vld [vmem:[#allocation2] sm:$0xff]
    %v46 = vld [vmem:[#allocation2 + $0x8] sm:$0xff]
    %v47 = vld [vmem:[#allocation2 + $0x10] sm:$0xff]
    %v48 = vld [vmem:[#allocation2 + $0x18] sm:$0xff]
    %v49 = vld [vmem:[#allocation2 + $0x20] sm:$0xff]
    %v50 = vld [vmem:[#allocation2 + $0x28] sm:$0xff]
    %v51 = vld [vmem:[#allocation2 + $0x30] sm:$0xff]
    %v52 = vld [vmem:[#allocation2 + $0x38] sm:$0xff]
    %v53 = vld [vmem:[#allocation5] sm:$0xf]
    %v54 = vld [vmem:[#allocation5 + $0x4] sm:$0xf]
    %v55 = vld [vmem:[#allocation5 + $0x8] sm:$0xf]
    %v56 = vld [vmem:[#allocation5 + $0xc] sm:$0xf]
    %v57 = vld [vmem:[#allocation5 + $0x10] sm:$0xf]
    %v58 = vld [vmem:[#allocation5 + $0x14] sm:$0xf]
    %v59 = vld [vmem:[#allocation5 + $0x18] sm:$0xf]
    %v60 = vld [vmem:[#allocation5 + $0x1c] sm:$0xf]
    %v61 = vld [vmem:[#allocation5 + $0x20] sm:$0xf]
    %v62 = vld [vmem:[#allocation5 + $0x24] sm:$0xf]
    %v63 = vld [vmem:[#allocation5 + $0x28] sm:$0xf]
    %v64 = vld [vmem:[#allocation5 + $0x2c] sm:$0xf]
    %v65 = vld [vmem:[#allocation5 + $0x30] sm:$0xf]
    %v66 = vld [vmem:[#allocation5 + $0x34] sm:$0xf]
    %v67 = vld [vmem:[#allocation5 + $0x38] sm:$0xf]
    %v68 = vld [vmem:[#allocation5 + $0x3c] sm:$0xf]
    %v69 = vld [vmem:[#allocation5 + $0x40] sm:$0xf]
    %v70 = vld [vmem:[#allocation5 + $0x44] sm:$0xf]
    %v71 = vld [vmem:[#allocation5 + $0x48] sm:$0xf]
    %v72 = vld [vmem:[#allocation5 + $0x4c] sm:$0xf]
    %v73 = vld [vmem:[#allocation5 + $0x50] sm:$0xf]
    %v74 = vld [vmem:[#allocation5 + $0x54] sm:$0xf]
    %v75 = vld [vmem:[#allocation5 + $0x58] sm:$0xf]
    %v76 = vld [vmem:[#allocation5 + $0x5c] sm:$0xf]
    %v77 = vld [vmem:[#allocation5 + $0x60] sm:$0xf]
    %v78 = vld [vmem:[#allocation5 + $0x64] sm:$0xf]
    %v79 = vld [vmem:[#allocation5 + $0x68] sm:$0xf]
    %v80 = vld [vmem:[#allocation5 + $0x6c] sm:$0xf]
    %v81 = vld [vmem:[#allocation5 + $0x70] sm:$0xf]
    %v82 = vld [vmem:[#allocation5 + $0x74] sm:$0xf]
    %v83 = vld [vmem:[#allocation5 + $0x78] sm:$0xf]
    %v84 = vld [vmem:[#allocation5 + $0x7c] sm:$0xf]
    %v85 = vld [vmem:[#allocation5 + $0x80] sm:$0xf]
    %v86 = vld [vmem:[#allocation5 + $0x84] sm:$0xf]
    %v87 = vld [vmem:[#allocation5 + $0x88] sm:$0xf]
    %v88 = vld [vmem:[#allocation5 + $0x8c] sm:$0xf]
    %v89 = vld [vmem:[#allocation5 + $0x90] sm:$0xf]
    %v90 = vld [vmem:[#allocation5 + $0x94] sm:$0xf]
    %v91 = vld [vmem:[#allocation5 + $0x98] sm:$0xf]
    %v92 = vld [vmem:[#allocation5 + $0x9c] sm:$0xf]
    %v93 = vld [vmem:[#allocation5 + $0xa0] sm:$0xf]
    %v94 = vld [vmem:[#allocation5 + $0xa4] sm:$0xf]
    %v95 = vld [vmem:[#allocation5 + $0xa8] sm:$0xf]
    %v96 = vld [vmem:[#allocation5 + $0xac] sm:$0xf]
    %v97 = vld [vmem:[#allocation5 + $0xb0] sm:$0xf]
    %v98 = vld [vmem:[#allocation5 + $0xb4] sm:$0xf]
    %v99 = vld [vmem:[#allocation5 + $0xb8] sm:$0xf]
    %v100 = vld [vmem:[#allocation5 + $0xbc] sm:$0xf]
    %v101 = vld [vmem:[#allocation5 + $0xc0] sm:$0xf]
    %v102 = vld [vmem:[#allocation5 + $0xc4] sm:$0xf]
    %v103 = vld [vmem:[#allocation5 + $0xc8] sm:$0xf]
    %v104 = vld [vmem:[#allocation5 + $0xcc] sm:$0xf]
    %v105 = vld [vmem:[#allocation5 + $0xd0] sm:$0xf]
    %v106 = vld [vmem:[#allocation5 + $0xd4] sm:$0xf]
    %v107 = vld [vmem:[#allocation5 + $0xd8] sm:$0xf]
    %v108 = vld [vmem:[#allocation5 + $0xdc] sm:$0xf]
    %v109 = vld [vmem:[#allocation5 + $0xe0] sm:$0xf]
    %v110 = vunpack.c.l.bf16 %v109
    %v111 = vpack.c.bf16 %v46, %v45
    %v112 = vpack.c.bf16 %v48, %v47
    %v113 = vpack.c.bf16 %v50, %v49
    %v114 = vpack.c.bf16 %v52, %v51
    %v123 = vunpack.c.l.b16 %v53
    %v124 = vunpack.c.l.b16 %v54
    %v125 = vunpack.c.l.b16 %v55
    %v126 = vunpack.c.l.b16 %v56
    %v127 = vunpack.c.l.b16 %v57
    %v128 = vunpack.c.l.b16 %v58
    %v129 = vunpack.c.l.b16 %v59
    %v130 = vunpack.c.l.b16 %v60
    %v131 = vpack.c.b16 %v124, %v123
    %v132 = vpack.c.b16 %v126, %v125
    %v133 = vpack.c.b16 %v128, %v127
    %v134 = vpack.c.b16 %v130, %v129
    %vm139 = vcmask 523264
    %v141 = vsel %vm139, %v111, 0
    %v144 = vsel %vm139, %v112, 0
    %v147 = vsel %vm139, %v113, 0
    %v150 = vsel %vm139, %v114, 0
    %152 = vmatpush.bf16.msra.mxu0 0
    %153 = vmatpush.bf16.msra.mxu0 0
    %154 = vmatpush.bf16.msra.mxu0 0
    %155 = vmatpush.bf16.msra.mxu0 0
    %156 = vmatpush.bf16.msra.mxu0 %v134
    %157 = vmatpush.bf16.msra.mxu0 %v133
    %158 = vmatpush.bf16.msra.mxu0 %v132
    %159 = vmatpush.bf16.msra.mxu0 %v131
    %160 = vmatmul.bf16.gmra.mxu0 %v141
    %v161 = vpop.f32.mrf.mxu0
    %v162 = vadd.f32 0.0, %v161
    %v163 = vpop.f32.mrf.mxu0
    %v164 = vadd.f32 0.0, %v163
    %165 = vmatmul.bf16.gmra.mxu0 %v144
    %v166 = vpop.f32.mrf.mxu0
    %v167 = vadd.f32 0.0, %v166
    %v168 = vpop.f32.mrf.mxu0
    %v169 = vadd.f32 0.0, %v168
    %170 = vmatmul.bf16.gmra.mxu0 %v147
    %v171 = vpop.f32.mrf.mxu0
    %v172 = vadd.f32 0.0, %v171
    %v173 = vpop.f32.mrf.mxu0
    %v174 = vadd.f32 0.0, %v173
    %175 = vmatmul.bf16.gmra.mxu0 %v150
    %v176 = vpop.f32.mrf.mxu0
    %v177 = vadd.f32 0.0, %v176
    %v178 = vpop.f32.mrf.mxu0
    %v179 = vadd.f32 0.0, %v178
    %180 = vdwg.mxu0
    %v181 = vperm.slane %v110, 0
    %v182 = vadd.f32 %v162, %v181
    %v183 = vadd.f32 %v164, %v181
    %v184 = vadd.f32 %v167, %v181
    %v185 = vadd.f32 %v169, %v181
    %v186 = vadd.f32 %v172, %v181
    %v187 = vadd.f32 %v174, %v181
    %v188 = vadd.f32 %v177, %v181
    %v189 = vadd.f32 %v179, %v181
    %v190 = vsub.f32 %v181, %v162
    %v191 = vsub.f32 %v181, %v164
    %v192 = vsub.f32 %v181, %v167
    %v193 = vsub.f32 %v181, %v169
    %v194 = vsub.f32 %v181, %v172
    %v195 = vsub.f32 %v181, %v174
    %v196 = vsub.f32 %v181, %v177
    %v197 = vsub.f32 %v181, %v179
    %v198 = vmax.f32 %v182, 0.0
    %v199 = vmax.f32 %v183, 0.0
    %v200 = vmax.f32 %v184, 0.0
    %v201 = vmax.f32 %v185, 0.0
    %v202 = vmax.f32 %v186, 0.0
    %v203 = vmax.f32 %v187, 0.0
    %v204 = vmax.f32 %v188, 0.0
    %v205 = vmax.f32 %v189, 0.0
    %v206 = vmax.f32 %v190, 0.0
    %v207 = vmax.f32 %v191, 0.0
    %v208 = vmax.f32 %v192, 0.0
    %v209 = vmax.f32 %v193, 0.0
    %v210 = vmax.f32 %v194, 0.0
    %v211 = vmax.f32 %v195, 0.0
    %v212 = vmax.f32 %v196, 0.0
    %v213 = vmax.f32 %v197, 0.0
    %v214 = vpack.c.bf16 %v199, %v198
    %v215 = vpack.c.bf16 %v201, %v200
    %v216 = vpack.c.bf16 %v203, %v202
    %v217 = vpack.c.bf16 %v205, %v204
    %v218 = vpack.c.bf16 %v207, %v206
    %v219 = vpack.c.bf16 %v209, %v208
    %v220 = vpack.c.bf16 %v211, %v210
    %v221 = vpack.c.bf16 %v213, %v212
    %v238 = vunpack.c.l.b16 %v93
    %v239 = vunpack.c.l.b16 %v94
    %v240 = vunpack.c.l.b16 %v95
    %v241 = vunpack.c.l.b16 %v96
    %v242 = vunpack.c.l.b16 %v97
    %v243 = vunpack.c.l.b16 %v98
    %v244 = vunpack.c.l.b16 %v99
    %v245 = vunpack.c.l.b16 %v100
    %v246 = vunpack.c.l.b16 %v101
    %v247 = vunpack.c.l.b16 %v102
    %v248 = vunpack.c.l.b16 %v103
    %v249 = vunpack.c.l.b16 %v104
    %v250 = vunpack.c.l.b16 %v105
    %v251 = vunpack.c.l.b16 %v106
    %v252 = vunpack.c.l.b16 %v107
    %v253 = vunpack.c.l.b16 %v108
    %v254 = vpack.c.b16 %v239, %v238
    %v255 = vpack.c.b16 %v241, %v240
    %v256 = vpack.c.b16 %v243, %v242
    %v257 = vpack.c.b16 %v245, %v244
    %v258 = vpack.c.b16 %v247, %v246
    %v259 = vpack.c.b16 %v249, %v248
    %v260 = vpack.c.b16 %v251, %v250
    %v261 = vpack.c.b16 %v253, %v252
    %270 = vmatpush.bf16.msra.mxu0 %v261
    %271 = vmatpush.bf16.msra.mxu0 %v260
    %272 = vmatpush.bf16.msra.mxu0 %v259
    %273 = vmatpush.bf16.msra.mxu0 %v258
    %274 = vmatpush.bf16.msra.mxu0 %v257
    %275 = vmatpush.bf16.msra.mxu0 %v256
    %276 = vmatpush.bf16.msra.mxu0 %v255
    %277 = vmatpush.bf16.msra.mxu0 %v254
    %278 = vmatmul.bf16.gmra.mxu0 %v214
    %v279 = vpop.f32.mrf.mxu0
    %v280 = vadd.f32 0.0, %v279
    %v281 = vpop.f32.mrf.mxu0
    %v282 = vadd.f32 0.0, %v281
    %283 = vmatmul.bf16.gmra.mxu0 %v215
    %v284 = vpop.f32.mrf.mxu0
    %v285 = vadd.f32 0.0, %v284
    %v286 = vpop.f32.mrf.mxu0
    %v287 = vadd.f32 0.0, %v286
    %288 = vmatmul.bf16.gmra.mxu0 %v216
    %v289 = vpop.f32.mrf.mxu0
    %v290 = vadd.f32 0.0, %v289
    %v291 = vpop.f32.mrf.mxu0
    %v292 = vadd.f32 0.0, %v291
    %293 = vmatmul.bf16.gmra.mxu0 %v217
    %v294 = vpop.f32.mrf.mxu0
    %v295 = vadd.f32 0.0, %v294
    %v296 = vpop.f32.mrf.mxu0
    %v297 = vadd.f32 0.0, %v296
    %298 = vmatmul.bf16.gmra.mxu0 %v218
    %v299 = vpop.f32.mrf.mxu0
    %v300 = vadd.f32 0.0, %v299
    %v301 = vpop.f32.mrf.mxu0
    %v302 = vadd.f32 0.0, %v301
    %303 = vmatmul.bf16.gmra.mxu0 %v219
    %v304 = vpop.f32.mrf.mxu0
    %v305 = vadd.f32 0.0, %v304
    %v306 = vpop.f32.mrf.mxu0
    %v307 = vadd.f32 0.0, %v306
    %308 = vmatmul.bf16.gmra.mxu0 %v220
    %v309 = vpop.f32.mrf.mxu0
    %v310 = vadd.f32 0.0, %v309
    %v311 = vpop.f32.mrf.mxu0
    %v312 = vadd.f32 0.0, %v311
    %313 = vmatmul.bf16.gmra.mxu0 %v221
    %v314 = vpop.f32.mrf.mxu0
    %v315 = vadd.f32 0.0, %v314
    %v316 = vpop.f32.mrf.mxu0
    %v317 = vadd.f32 0.0, %v316
    %318 = vdwg.mxu0
    %v319 = vsub.f32 %v198, %v280
    %v320 = vsub.f32 %v199, %v282
    %v321 = vsub.f32 %v200, %v285
    %v322 = vsub.f32 %v201, %v287
    %v323 = vsub.f32 %v202, %v290
    %v324 = vsub.f32 %v203, %v292
    %v325 = vsub.f32 %v204, %v295
    %v326 = vsub.f32 %v205, %v297
    %v327 = vsub.f32 %v206, %v300
    %v328 = vsub.f32 %v207, %v302
    %v329 = vsub.f32 %v208, %v305
    %v330 = vsub.f32 %v209, %v307
    %v331 = vsub.f32 %v210, %v310
    %v332 = vsub.f32 %v211, %v312
    %v333 = vsub.f32 %v212, %v315
    %v334 = vsub.f32 %v213, %v317
    %v335 = vmul.f32 %v319, %v319
    %v336 = vmul.f32 %v320, %v320
    %v337 = vmul.f32 %v321, %v321
    %v338 = vmul.f32 %v322, %v322
    %v339 = vmul.f32 %v323, %v323
    %v340 = vmul.f32 %v324, %v324
    %v341 = vmul.f32 %v325, %v325
    %v342 = vmul.f32 %v326, %v326
    %v343 = vmul.f32 %v327, %v327
    %v344 = vmul.f32 %v328, %v328
    %v345 = vmul.f32 %v329, %v329
    %v346 = vmul.f32 %v330, %v330
    %v347 = vmul.f32 %v331, %v331
    %v348 = vmul.f32 %v332, %v332
    %v349 = vmul.f32 %v333, %v333
    %v350 = vmul.f32 %v334, %v334
    %v351 = vpack.c.bf16 %v336, %v335
    %v352 = vpack.c.bf16 %v338, %v337
    %v353 = vpack.c.bf16 %v340, %v339
    %v354 = vpack.c.bf16 %v342, %v341
    %v355 = vpack.c.bf16 %v344, %v343
    %v356 = vpack.c.bf16 %v346, %v345
    %v357 = vpack.c.bf16 %v348, %v347
    %v358 = vpack.c.bf16 %v350, %v349
    %359 = vmatpush.bf16.msra.mxu0 %v261
    %360 = vmatpush.bf16.msra.mxu0 %v260
    %361 = vmatpush.bf16.msra.mxu0 %v259
    %362 = vmatpush.bf16.msra.mxu0 %v258
    %363 = vmatpush.bf16.msra.mxu0 %v257
    %364 = vmatpush.bf16.msra.mxu0 %v256
    %365 = vmatpush.bf16.msra.mxu0 %v255
    %366 = vmatpush.bf16.msra.mxu0 %v254
    %367 = vmatmul.bf16.gmra.mxu0 %v351
    %v368 = vpop.f32.mrf.mxu0
    %v369 = vadd.f32 1e-05, %v368
    %v370 = vpop.f32.mrf.mxu0
    %v371 = vadd.f32 1e-05, %v370
    %372 = vmatmul.bf16.gmra.mxu0 %v352
    %v373 = vpop.f32.mrf.mxu0
    %v374 = vadd.f32 1e-05, %v373
    %v375 = vpop.f32.mrf.mxu0
    %v376 = vadd.f32 1e-05, %v375
    %377 = vmatmul.bf16.gmra.mxu0 %v353
    %v378 = vpop.f32.mrf.mxu0
    %v379 = vadd.f32 1e-05, %v378
    %v380 = vpop.f32.mrf.mxu0
    %v381 = vadd.f32 1e-05, %v380
    %382 = vmatmul.bf16.gmra.mxu0 %v354
    %v383 = vpop.f32.mrf.mxu0
    %v384 = vadd.f32 1e-05, %v383
    %v385 = vpop.f32.mrf.mxu0
    %v386 = vadd.f32 1e-05, %v385
    %387 = vmatmul.bf16.gmra.mxu0 %v355
    %v388 = vpop.f32.mrf.mxu0
    %v389 = vadd.f32 1e-05, %v388
    %v390 = vpop.f32.mrf.mxu0
    %v391 = vadd.f32 1e-05, %v390
    %392 = vmatmul.bf16.gmra.mxu0 %v356
    %v393 = vpop.f32.mrf.mxu0
    %v394 = vadd.f32 1e-05, %v393
    %v395 = vpop.f32.mrf.mxu0
    %v396 = vadd.f32 1e-05, %v395
    %397 = vmatmul.bf16.gmra.mxu0 %v357
    %v398 = vpop.f32.mrf.mxu0
    %v399 = vadd.f32 1e-05, %v398
    %v400 = vpop.f32.mrf.mxu0
    %v401 = vadd.f32 1e-05, %v400
    %402 = vmatmul.bf16.gmra.mxu0 %v358
    %v403 = vpop.f32.mrf.mxu0
    %v404 = vadd.f32 1e-05, %v403
    %v405 = vpop.f32.mrf.mxu0
    %v406 = vadd.f32 1e-05, %v405
    %407 = vdwg.mxu0
    %v408 = vrsqrt.pop %v369
    %v409 = vmul.f32 %v408, %v369
    %v410 = vmul.f32 %v409, %v408
    %v411 = vmul.f32 0.5, %v410
    %v412 = vsub.f32 1.5, %v411
    %v413 = vmul.f32 %v408, %v412
    %vm414 = vweird.f32 %v369
    %vm415 = vweird.f32 %v408
    %vm416 = vmor %vm414, %vm415
    %v417 = vsel %vm416, %v408, %v413
    %v418 = vrsqrt.pop %v371
    %v419 = vmul.f32 %v418, %v371
    %v420 = vmul.f32 %v419, %v418
    %v421 = vmul.f32 0.5, %v420
    %v422 = vsub.f32 1.5, %v421
    %v423 = vmul.f32 %v418, %v422
    %vm424 = vweird.f32 %v371
    %vm425 = vweird.f32 %v418
    %vm426 = vmor %vm424, %vm425
    %v427 = vsel %vm426, %v418, %v423
    %v428 = vrsqrt.pop %v374
    %v429 = vmul.f32 %v428, %v374
    %v430 = vmul.f32 %v429, %v428
    %v431 = vmul.f32 0.5, %v430
    %v432 = vsub.f32 1.5, %v431
    %v433 = vmul.f32 %v428, %v432
    %vm434 = vweird.f32 %v374
    %vm435 = vweird.f32 %v428
    %vm436 = vmor %vm434, %vm435
    %v437 = vsel %vm436, %v428, %v433
    %v438 = vrsqrt.pop %v376
    %v439 = vmul.f32 %v438, %v376
    %v440 = vmul.f32 %v439, %v438
    %v441 = vmul.f32 0.5, %v440
    %v442 = vsub.f32 1.5, %v441
    %v443 = vmul.f32 %v438, %v442
    %vm444 = vweird.f32 %v376
    %vm445 = vweird.f32 %v438
    %vm446 = vmor %vm444, %vm445
    %v447 = vsel %vm446, %v438, %v443
    %v448 = vrsqrt.pop %v379
    %v449 = vmul.f32 %v448, %v379
    %v450 = vmul.f32 %v449, %v448
    %v451 = vmul.f32 0.5, %v450
    %v452 = vsub.f32 1.5, %v451
    %v453 = vmul.f32 %v448, %v452
    %vm454 = vweird.f32 %v379
    %vm455 = vweird.f32 %v448
    %vm456 = vmor %vm454, %vm455
    %v457 = vsel %vm456, %v448, %v453
    %v458 = vrsqrt.pop %v381
    %v459 = vmul.f32 %v458, %v381
    %v460 = vmul.f32 %v459, %v458
    %v461 = vmul.f32 0.5, %v460
    %v462 = vsub.f32 1.5, %v461
    %v463 = vmul.f32 %v458, %v462
    %vm464 = vweird.f32 %v381
    %vm465 = vweird.f32 %v458
    %vm466 = vmor %vm464, %vm465
    %v467 = vsel %vm466, %v458, %v463
    %v468 = vrsqrt.pop %v384
    %v469 = vmul.f32 %v468, %v384
    %v470 = vmul.f32 %v469, %v468
    %v471 = vmul.f32 0.5, %v470
    %v472 = vsub.f32 1.5, %v471
    %v473 = vmul.f32 %v468, %v472
    %vm474 = vweird.f32 %v384
    %vm475 = vweird.f32 %v468
    %vm476 = vmor %vm474, %vm475
    %v477 = vsel %vm476, %v468, %v473
    %v478 = vrsqrt.pop %v386
    %v479 = vmul.f32 %v478, %v386
    %v480 = vmul.f32 %v479, %v478
    %v481 = vmul.f32 0.5, %v480
    %v482 = vsub.f32 1.5, %v481
    %v483 = vmul.f32 %v478, %v482
    %vm484 = vweird.f32 %v386
    %vm485 = vweird.f32 %v478
    %vm486 = vmor %vm484, %vm485
    %v487 = vsel %vm486, %v478, %v483
    %v488 = vrsqrt.pop %v389
    %v489 = vmul.f32 %v488, %v389
    %v490 = vmul.f32 %v489, %v488
    %v491 = vmul.f32 0.5, %v490
    %v492 = vsub.f32 1.5, %v491
    %v493 = vmul.f32 %v488, %v492
    %vm494 = vweird.f32 %v389
    %vm495 = vweird.f32 %v488
    %vm496 = vmor %vm494, %vm495
    %v497 = vsel %vm496, %v488, %v493
    %v498 = vrsqrt.pop %v391
    %v499 = vmul.f32 %v498, %v391
    %v500 = vmul.f32 %v499, %v498
    %v501 = vmul.f32 0.5, %v500
    %v502 = vsub.f32 1.5, %v501
    %v503 = vmul.f32 %v498, %v502
    %vm504 = vweird.f32 %v391
    %vm505 = vweird.f32 %v498
    %vm506 = vmor %vm504, %vm505
    %v507 = vsel %vm506, %v498, %v503
    %v508 = vrsqrt.pop %v394
    %v509 = vmul.f32 %v508, %v394
    %v510 = vmul.f32 %v509, %v508
    %v511 = vmul.f32 0.5, %v510
    %v512 = vsub.f32 1.5, %v511
    %v513 = vmul.f32 %v508, %v512
    %vm514 = vweird.f32 %v394
    %vm515 = vweird.f32 %v508
    %vm516 = vmor %vm514, %vm515
    %v517 = vsel %vm516, %v508, %v513
    %v518 = vrsqrt.pop %v396
    %v519 = vmul.f32 %v518, %v396
    %v520 = vmul.f32 %v519, %v518
    %v521 = vmul.f32 0.5, %v520
    %v522 = vsub.f32 1.5, %v521
    %v523 = vmul.f32 %v518, %v522
    %vm524 = vweird.f32 %v396
    %vm525 = vweird.f32 %v518
    %vm526 = vmor %vm524, %vm525
    %v527 = vsel %vm526, %v518, %v523
    %v528 = vrsqrt.pop %v399
    %v529 = vmul.f32 %v528, %v399
    %v530 = vmul.f32 %v529, %v528
    %v531 = vmul.f32 0.5, %v530
    %v532 = vsub.f32 1.5, %v531
    %v533 = vmul.f32 %v528, %v532
    %vm534 = vweird.f32 %v399
    %vm535 = vweird.f32 %v528
    %vm536 = vmor %vm534, %vm535
    %v537 = vsel %vm536, %v528, %v533
    %v538 = vrsqrt.pop %v401
    %v539 = vmul.f32 %v538, %v401
    %v540 = vmul.f32 %v539, %v538
    %v541 = vmul.f32 0.5, %v540
    %v542 = vsub.f32 1.5, %v541
    %v543 = vmul.f32 %v538, %v542
    %vm544 = vweird.f32 %v401
    %vm545 = vweird.f32 %v538
    %vm546 = vmor %vm544, %vm545
    %v547 = vsel %vm546, %v538, %v543
    %v548 = vrsqrt.pop %v404
    %v549 = vmul.f32 %v548, %v404
    %v550 = vmul.f32 %v549, %v548
    %v551 = vmul.f32 0.5, %v550
    %v552 = vsub.f32 1.5, %v551
    %v553 = vmul.f32 %v548, %v552
    %vm554 = vweird.f32 %v404
    %vm555 = vweird.f32 %v548
    %vm556 = vmor %vm554, %vm555
    %v557 = vsel %vm556, %v548, %v553
    %v558 = vrsqrt.pop %v406
    %v559 = vmul.f32 %v558, %v406
    %v560 = vmul.f32 %v559, %v558
    %v561 = vmul.f32 0.5, %v560
    %v562 = vsub.f32 1.5, %v561
    %v563 = vmul.f32 %v558, %v562
    %vm564 = vweird.f32 %v406
    %vm565 = vweird.f32 %v558
    %vm566 = vmor %vm564, %vm565
    %v567 = vsel %vm566, %v558, %v563
    %v568 = vmul.f32 %v319, %v417
    %v569 = vmul.f32 %v320, %v427
    %v570 = vmul.f32 %v321, %v437
    %v571 = vmul.f32 %v322, %v447
    %v572 = vmul.f32 %v323, %v457
    %v573 = vmul.f32 %v324, %v467
    %v574 = vmul.f32 %v325, %v477
    %v575 = vmul.f32 %v326, %v487
    %v576 = vmul.f32 %v327, %v497
    %v577 = vmul.f32 %v328, %v507
    %v578 = vmul.f32 %v329, %v517
    %v579 = vmul.f32 %v330, %v527
    %v580 = vmul.f32 %v331, %v537
    %v581 = vmul.f32 %v332, %v547
    %v582 = vmul.f32 %v333, %v557
    %v583 = vmul.f32 %v334, %v567
    %v584 = vperm.slane %v110, 1
    %v585 = vmul.f32 %v568, %v584
    %v586 = vmul.f32 %v569, %v584
    %v587 = vmul.f32 %v570, %v584
    %v588 = vmul.f32 %v571, %v584
    %v589 = vmul.f32 %v572, %v584
    %v590 = vmul.f32 %v573, %v584
    %v591 = vmul.f32 %v574, %v584
    %v592 = vmul.f32 %v575, %v584
    %v593 = vmul.f32 %v576, %v584
    %v594 = vmul.f32 %v577, %v584
    %v595 = vmul.f32 %v578, %v584
    %v596 = vmul.f32 %v579, %v584
    %v597 = vmul.f32 %v580, %v584
    %v598 = vmul.f32 %v581, %v584
    %v599 = vmul.f32 %v582, %v584
    %v600 = vmul.f32 %v583, %v584
    %v601 = vperm.slane %v110, 2
    %v602 = vadd.f32 %v585, %v601
    %v603 = vadd.f32 %v586, %v601
    %v604 = vadd.f32 %v587, %v601
    %v605 = vadd.f32 %v588, %v601
    %v606 = vadd.f32 %v589, %v601
    %v607 = vadd.f32 %v590, %v601
    %v608 = vadd.f32 %v591, %v601
    %v609 = vadd.f32 %v592, %v601
    %v610 = vadd.f32 %v593, %v601
    %v611 = vadd.f32 %v594, %v601
    %v612 = vadd.f32 %v595, %v601
    %v613 = vadd.f32 %v596, %v601
    %v614 = vadd.f32 %v597, %v601
    %v615 = vadd.f32 %v598, %v601
    %v616 = vadd.f32 %v599, %v601
    %v617 = vadd.f32 %v600, %v601
    %v618 = vpack.c.bf16 %v603, %v602
    %v619 = vpack.c.bf16 %v605, %v604
    %v620 = vpack.c.bf16 %v607, %v606
    %v621 = vpack.c.bf16 %v609, %v608
    %v622 = vpack.c.bf16 %v611, %v610
    %v623 = vpack.c.bf16 %v613, %v612
    %v624 = vpack.c.bf16 %v615, %v614
    %v625 = vpack.c.bf16 %v617, %v616
    %v626 = vperm.slane %v110, 3
    %v643 = vunpack.c.l.b16 %v61
    %v644 = vunpack.c.l.b16 %v62
    %v645 = vunpack.c.l.b16 %v63
    %v646 = vunpack.c.l.b16 %v64
    %v647 = vunpack.c.l.b16 %v65
    %v648 = vunpack.c.l.b16 %v66
    %v649 = vunpack.c.l.b16 %v67
    %v650 = vunpack.c.l.b16 %v68
    %v651 = vunpack.c.l.b16 %v69
    %v652 = vunpack.c.l.b16 %v70
    %v653 = vunpack.c.l.b16 %v71
    %v654 = vunpack.c.l.b16 %v72
    %v655 = vunpack.c.l.b16 %v73
    %v656 = vunpack.c.l.b16 %v74
    %v657 = vunpack.c.l.b16 %v75
    %v658 = vunpack.c.l.b16 %v76
    %v659 = vpack.c.b16 %v644, %v643
    %v660 = vpack.c.b16 %v646, %v645
    %v661 = vpack.c.b16 %v648, %v647
    %v662 = vpack.c.b16 %v650, %v649
    %v663 = vpack.c.b16 %v652, %v651
    %v664 = vpack.c.b16 %v654, %v653
    %v665 = vpack.c.b16 %v656, %v655
    %v666 = vpack.c.b16 %v658, %v657
    %675 = vmatpush.bf16.msra.mxu0 %v666
    %676 = vmatpush.bf16.msra.mxu0 %v665
    %677 = vmatpush.bf16.msra.mxu0 %v664
    %678 = vmatpush.bf16.msra.mxu0 %v663
    %679 = vmatpush.bf16.msra.mxu0 %v662
    %680 = vmatpush.bf16.msra.mxu0 %v661
    %681 = vmatpush.bf16.msra.mxu0 %v660
    %682 = vmatpush.bf16.msra.mxu0 %v659
    %683 = vmatmul.bf16.gmra.mxu0 %v618
    %v684 = vpop.f32.mrf.mxu0
    %v685 = vadd.f32 %v626, %v684
    %v686 = vpop.f32.mrf.mxu0
    %v687 = vadd.f32 %v626, %v686
    %688 = vmatmul.bf16.gmra.mxu0 %v619
    %v689 = vpop.f32.mrf.mxu0
    %v690 = vadd.f32 %v626, %v689
    %v691 = vpop.f32.mrf.mxu0
    %v692 = vadd.f32 %v626, %v691
    %693 = vmatmul.bf16.gmra.mxu0 %v620
    %v694 = vpop.f32.mrf.mxu0
    %v695 = vadd.f32 %v626, %v694
    %v696 = vpop.f32.mrf.mxu0
    %v697 = vadd.f32 %v626, %v696
    %698 = vmatmul.bf16.gmra.mxu0 %v621
    %v699 = vpop.f32.mrf.mxu0
    %v700 = vadd.f32 %v626, %v699
    %v701 = vpop.f32.mrf.mxu0
    %v702 = vadd.f32 %v626, %v701
    %703 = vmatmul.bf16.gmra.mxu0 %v622
    %v704 = vpop.f32.mrf.mxu0
    %v705 = vadd.f32 %v626, %v704
    %v706 = vpop.f32.mrf.mxu0
    %v707 = vadd.f32 %v626, %v706
    %708 = vmatmul.bf16.gmra.mxu0 %v623
    %v709 = vpop.f32.mrf.mxu0
    %v710 = vadd.f32 %v626, %v709
    %v711 = vpop.f32.mrf.mxu0
    %v712 = vadd.f32 %v626, %v711
    %713 = vmatmul.bf16.gmra.mxu0 %v624
    %v714 = vpop.f32.mrf.mxu0
    %v715 = vadd.f32 %v626, %v714
    %v716 = vpop.f32.mrf.mxu0
    %v717 = vadd.f32 %v626, %v716
    %718 = vmatmul.bf16.gmra.mxu0 %v625
    %v719 = vpop.f32.mrf.mxu0
    %v720 = vadd.f32 %v626, %v719
    %v721 = vpop.f32.mrf.mxu0
    %v722 = vadd.f32 %v626, %v721
    %723 = vdwg.mxu0
    %v724 = vmax.f32 %v685, 0.0
    %v725 = vmax.f32 %v687, 0.0
    %v726 = vmax.f32 %v690, 0.0
    %v727 = vmax.f32 %v692, 0.0
    %v728 = vmax.f32 %v695, 0.0
    %v729 = vmax.f32 %v697, 0.0
    %v730 = vmax.f32 %v700, 0.0
    %v731 = vmax.f32 %v702, 0.0
    %v732 = vmax.f32 %v705, 0.0
    %v733 = vmax.f32 %v707, 0.0
    %v734 = vmax.f32 %v710, 0.0
    %v735 = vmax.f32 %v712, 0.0
    %v736 = vmax.f32 %v715, 0.0
    %v737 = vmax.f32 %v717, 0.0
    %v738 = vmax.f32 %v720, 0.0
    %v739 = vmax.f32 %v722, 0.0
    %v740 = vpack.c.bf16 %v725, %v724
    %v741 = vpack.c.bf16 %v727, %v726
    %v742 = vpack.c.bf16 %v729, %v728
    %v743 = vpack.c.bf16 %v731, %v730
    %v744 = vpack.c.bf16 %v733, %v732
    %v745 = vpack.c.bf16 %v735, %v734
    %v746 = vpack.c.bf16 %v737, %v736
    %v747 = vpack.c.bf16 %v739, %v738
    %748 = vmatpush.bf16.msra.mxu0 %v261
    %749 = vmatpush.bf16.msra.mxu0 %v260
    %750 = vmatpush.bf16.msra.mxu0 %v259
    %751 = vmatpush.bf16.msra.mxu0 %v258
    %752 = vmatpush.bf16.msra.mxu0 %v257
    %753 = vmatpush.bf16.msra.mxu0 %v256
    %754 = vmatpush.bf16.msra.mxu0 %v255
    %755 = vmatpush.bf16.msra.mxu0 %v254
    %756 = vmatmul.bf16.gmra.mxu0 %v740
    %v757 = vpop.f32.mrf.mxu0
    %v758 = vadd.f32 0.0, %v757
    %v759 = vpop.f32.mrf.mxu0
    %v760 = vadd.f32 0.0, %v759
    %761 = vmatmul.bf16.gmra.mxu0 %v741
    %v762 = vpop.f32.mrf.mxu0
    %v763 = vadd.f32 0.0, %v762
    %v764 = vpop.f32.mrf.mxu0
    %v765 = vadd.f32 0.0, %v764
    %766 = vmatmul.bf16.gmra.mxu0 %v742
    %v767 = vpop.f32.mrf.mxu0
    %v768 = vadd.f32 0.0, %v767
    %v769 = vpop.f32.mrf.mxu0
    %v770 = vadd.f32 0.0, %v769
    %771 = vmatmul.bf16.gmra.mxu0 %v743
    %v772 = vpop.f32.mrf.mxu0
    %v773 = vadd.f32 0.0, %v772
    %v774 = vpop.f32.mrf.mxu0
    %v775 = vadd.f32 0.0, %v774
    %776 = vmatmul.bf16.gmra.mxu0 %v744
    %v777 = vpop.f32.mrf.mxu0
    %v778 = vadd.f32 0.0, %v777
    %v779 = vpop.f32.mrf.mxu0
    %v780 = vadd.f32 0.0, %v779
    %781 = vmatmul.bf16.gmra.mxu0 %v745
    %v782 = vpop.f32.mrf.mxu0
    %v783 = vadd.f32 0.0, %v782
    %v784 = vpop.f32.mrf.mxu0
    %v785 = vadd.f32 0.0, %v784
    %786 = vmatmul.bf16.gmra.mxu0 %v746
    %v787 = vpop.f32.mrf.mxu0
    %v788 = vadd.f32 0.0, %v787
    %v789 = vpop.f32.mrf.mxu0
    %v790 = vadd.f32 0.0, %v789
    %791 = vmatmul.bf16.gmra.mxu0 %v747
    %v792 = vpop.f32.mrf.mxu0
    %v793 = vadd.f32 0.0, %v792
    %v794 = vpop.f32.mrf.mxu0
    %v795 = vadd.f32 0.0, %v794
    %796 = vdwg.mxu0
    %v797 = vsub.f32 %v724, %v758
    %v798 = vsub.f32 %v725, %v760
    %v799 = vsub.f32 %v726, %v763
    %v800 = vsub.f32 %v727, %v765
    %v801 = vsub.f32 %v728, %v768
    %v802 = vsub.f32 %v729, %v770
    %v803 = vsub.f32 %v730, %v773
    %v804 = vsub.f32 %v731, %v775
    %v805 = vsub.f32 %v732, %v778
    %v806 = vsub.f32 %v733, %v780
    %v807 = vsub.f32 %v734, %v783
    %v808 = vsub.f32 %v735, %v785
    %v809 = vsub.f32 %v736, %v788
    %v810 = vsub.f32 %v737, %v790
    %v811 = vsub.f32 %v738, %v793
    %v812 = vsub.f32 %v739, %v795
    %v813 = vmul.f32 %v797, %v797
    %v814 = vmul.f32 %v798, %v798
    %v815 = vmul.f32 %v799, %v799
    %v816 = vmul.f32 %v800, %v800
    %v817 = vmul.f32 %v801, %v801
    %v818 = vmul.f32 %v802, %v802
    %v819 = vmul.f32 %v803, %v803
    %v820 = vmul.f32 %v804, %v804
    %v821 = vmul.f32 %v805, %v805
    %v822 = vmul.f32 %v806, %v806
    %v823 = vmul.f32 %v807, %v807
    %v824 = vmul.f32 %v808, %v808
    %v825 = vmul.f32 %v809, %v809
    %v826 = vmul.f32 %v810, %v810
    %v827 = vmul.f32 %v811, %v811
    %v828 = vmul.f32 %v812, %v812
    %v829 = vpack.c.bf16 %v814, %v813
    %v830 = vpack.c.bf16 %v816, %v815
    %v831 = vpack.c.bf16 %v818, %v817
    %v832 = vpack.c.bf16 %v820, %v819
    %v833 = vpack.c.bf16 %v822, %v821
    %v834 = vpack.c.bf16 %v824, %v823
    %v835 = vpack.c.bf16 %v826, %v825
    %v836 = vpack.c.bf16 %v828, %v827
    %837 = vmatpush.bf16.msra.mxu0 %v261
    %838 = vmatpush.bf16.msra.mxu0 %v260
    %839 = vmatpush.bf16.msra.mxu0 %v259
    %840 = vmatpush.bf16.msra.mxu0 %v258
    %841 = vmatpush.bf16.msra.mxu0 %v257
    %842 = vmatpush.bf16.msra.mxu0 %v256
    %843 = vmatpush.bf16.msra.mxu0 %v255
    %844 = vmatpush.bf16.msra.mxu0 %v254
    %845 = vmatmul.bf16.gmra.mxu0 %v829
    %v846 = vpop.f32.mrf.mxu0
    %v847 = vadd.f32 1e-05, %v846
    %v848 = vpop.f32.mrf.mxu0
    %v849 = vadd.f32 1e-05, %v848
    %850 = vmatmul.bf16.gmra.mxu0 %v830
    %v851 = vpop.f32.mrf.mxu0
    %v852 = vadd.f32 1e-05, %v851
    %v853 = vpop.f32.mrf.mxu0
    %v854 = vadd.f32 1e-05, %v853
    %855 = vmatmul.bf16.gmra.mxu0 %v831
    %v856 = vpop.f32.mrf.mxu0
    %v857 = vadd.f32 1e-05, %v856
    %v858 = vpop.f32.mrf.mxu0
    %v859 = vadd.f32 1e-05, %v858
    %860 = vmatmul.bf16.gmra.mxu0 %v832
    %v861 = vpop.f32.mrf.mxu0
    %v862 = vadd.f32 1e-05, %v861
    %v863 = vpop.f32.mrf.mxu0
    %v864 = vadd.f32 1e-05, %v863
    %865 = vmatmul.bf16.gmra.mxu0 %v833
    %v866 = vpop.f32.mrf.mxu0
    %v867 = vadd.f32 1e-05, %v866
    %v868 = vpop.f32.mrf.mxu0
    %v869 = vadd.f32 1e-05, %v868
    %870 = vmatmul.bf16.gmra.mxu0 %v834
    %v871 = vpop.f32.mrf.mxu0
    %v872 = vadd.f32 1e-05, %v871
    %v873 = vpop.f32.mrf.mxu0
    %v874 = vadd.f32 1e-05, %v873
    %875 = vmatmul.bf16.gmra.mxu0 %v835
    %v876 = vpop.f32.mrf.mxu0
    %v877 = vadd.f32 1e-05, %v876
    %v878 = vpop.f32.mrf.mxu0
    %v879 = vadd.f32 1e-05, %v878
    %880 = vmatmul.bf16.gmra.mxu0 %v836
    %v881 = vpop.f32.mrf.mxu0
    %v882 = vadd.f32 1e-05, %v881
    %v883 = vpop.f32.mrf.mxu0
    %v884 = vadd.f32 1e-05, %v883
    %885 = vdwg.mxu0
    %v886 = vrsqrt.pop %v847
    %v887 = vmul.f32 %v886, %v847
    %v888 = vmul.f32 %v887, %v886
    %v889 = vmul.f32 0.5, %v888
    %v890 = vsub.f32 1.5, %v889
    %v891 = vmul.f32 %v886, %v890
    %vm892 = vweird.f32 %v847
    %vm893 = vweird.f32 %v886
    %vm894 = vmor %vm892, %vm893
    %v895 = vsel %vm894, %v886, %v891
    %v896 = vrsqrt.pop %v849
    %v897 = vmul.f32 %v896, %v849
    %v898 = vmul.f32 %v897, %v896
    %v899 = vmul.f32 0.5, %v898
    %v900 = vsub.f32 1.5, %v899
    %v901 = vmul.f32 %v896, %v900
    %vm902 = vweird.f32 %v849
    %vm903 = vweird.f32 %v896
    %vm904 = vmor %vm902, %vm903
    %v905 = vsel %vm904, %v896, %v901
    %v906 = vrsqrt.pop %v852
    %v907 = vmul.f32 %v906, %v852
    %v908 = vmul.f32 %v907, %v906
    %v909 = vmul.f32 0.5, %v908
    %v910 = vsub.f32 1.5, %v909
    %v911 = vmul.f32 %v906, %v910
    %vm912 = vweird.f32 %v852
    %vm913 = vweird.f32 %v906
    %vm914 = vmor %vm912, %vm913
    %v915 = vsel %vm914, %v906, %v911
    %v916 = vrsqrt.pop %v854
    %v917 = vmul.f32 %v916, %v854
    %v918 = vmul.f32 %v917, %v916
    %v919 = vmul.f32 0.5, %v918
    %v920 = vsub.f32 1.5, %v919
    %v921 = vmul.f32 %v916, %v920
    %vm922 = vweird.f32 %v854
    %vm923 = vweird.f32 %v916
    %vm924 = vmor %vm922, %vm923
    %v925 = vsel %vm924, %v916, %v921
    %v926 = vrsqrt.pop %v857
    %v927 = vmul.f32 %v926, %v857
    %v928 = vmul.f32 %v927, %v926
    %v929 = vmul.f32 0.5, %v928
    %v930 = vsub.f32 1.5, %v929
    %v931 = vmul.f32 %v926, %v930
    %vm932 = vweird.f32 %v857
    %vm933 = vweird.f32 %v926
    %vm934 = vmor %vm932, %vm933
    %v935 = vsel %vm934, %v926, %v931
    %v936 = vrsqrt.pop %v859
    %v937 = vmul.f32 %v936, %v859
    %v938 = vmul.f32 %v937, %v936
    %v939 = vmul.f32 0.5, %v938
    %v940 = vsub.f32 1.5, %v939
    %v941 = vmul.f32 %v936, %v940
    %vm942 = vweird.f32 %v859
    %vm943 = vweird.f32 %v936
    %vm944 = vmor %vm942, %vm943
    %v945 = vsel %vm944, %v936, %v941
    %v946 = vrsqrt.pop %v862
    %v947 = vmul.f32 %v946, %v862
    %v948 = vmul.f32 %v947, %v946
    %v949 = vmul.f32 0.5, %v948
    %v950 = vsub.f32 1.5, %v949
    %v951 = vmul.f32 %v946, %v950
    %vm952 = vweird.f32 %v862
    %vm953 = vweird.f32 %v946
    %vm954 = vmor %vm952, %vm953
    %v955 = vsel %vm954, %v946, %v951
    %v956 = vrsqrt.pop %v864
    %v957 = vmul.f32 %v956, %v864
    %v958 = vmul.f32 %v957, %v956
    %v959 = vmul.f32 0.5, %v958
    %v960 = vsub.f32 1.5, %v959
    %v961 = vmul.f32 %v956, %v960
    %vm962 = vweird.f32 %v864
    %vm963 = vweird.f32 %v956
    %vm964 = vmor %vm962, %vm963
    %v965 = vsel %vm964, %v956, %v961
    %v966 = vrsqrt.pop %v867
    %v967 = vmul.f32 %v966, %v867
    %v968 = vmul.f32 %v967, %v966
    %v969 = vmul.f32 0.5, %v968
    %v970 = vsub.f32 1.5, %v969
    %v971 = vmul.f32 %v966, %v970
    %vm972 = vweird.f32 %v867
    %vm973 = vweird.f32 %v966
    %vm974 = vmor %vm972, %vm973
    %v975 = vsel %vm974, %v966, %v971
    %v976 = vrsqrt.pop %v869
    %v977 = vmul.f32 %v976, %v869
    %v978 = vmul.f32 %v977, %v976
    %v979 = vmul.f32 0.5, %v978
    %v980 = vsub.f32 1.5, %v979
    %v981 = vmul.f32 %v976, %v980
    %vm982 = vweird.f32 %v869
    %vm983 = vweird.f32 %v976
    %vm984 = vmor %vm982, %vm983
    %v985 = vsel %vm984, %v976, %v981
    %v986 = vrsqrt.pop %v872
    %v987 = vmul.f32 %v986, %v872
    %v988 = vmul.f32 %v987, %v986
    %v989 = vmul.f32 0.5, %v988
    %v990 = vsub.f32 1.5, %v989
    %v991 = vmul.f32 %v986, %v990
    %vm992 = vweird.f32 %v872
    %vm993 = vweird.f32 %v986
    %vm994 = vmor %vm992, %vm993
    %v995 = vsel %vm994, %v986, %v991
    %v996 = vrsqrt.pop %v874
    %v997 = vmul.f32 %v996, %v874
    %v998 = vmul.f32 %v997, %v996
    %v999 = vmul.f32 0.5, %v998
    %v1000 = vsub.f32 1.5, %v999
    %v1001 = vmul.f32 %v996, %v1000
    %vm1002 = vweird.f32 %v874
    %vm1003 = vweird.f32 %v996
    %vm1004 = vmor %vm1002, %vm1003
    %v1005 = vsel %vm1004, %v996, %v1001
    %v1006 = vrsqrt.pop %v877
    %v1007 = vmul.f32 %v1006, %v877
    %v1008 = vmul.f32 %v1007, %v1006
    %v1009 = vmul.f32 0.5, %v1008
    %v1010 = vsub.f32 1.5, %v1009
    %v1011 = vmul.f32 %v1006, %v1010
    %vm1012 = vweird.f32 %v877
    %vm1013 = vweird.f32 %v1006
    %vm1014 = vmor %vm1012, %vm1013
    %v1015 = vsel %vm1014, %v1006, %v1011
    %v1016 = vrsqrt.pop %v879
    %v1017 = vmul.f32 %v1016, %v879
    %v1018 = vmul.f32 %v1017, %v1016
    %v1019 = vmul.f32 0.5, %v1018
    %v1020 = vsub.f32 1.5, %v1019
    %v1021 = vmul.f32 %v1016, %v1020
    %vm1022 = vweird.f32 %v879
    %vm1023 = vweird.f32 %v1016
    %vm1024 = vmor %vm1022, %vm1023
    %v1025 = vsel %vm1024, %v1016, %v1021
    %v1026 = vrsqrt.pop %v882
    %v1027 = vmul.f32 %v1026, %v882
    %v1028 = vmul.f32 %v1027, %v1026
    %v1029 = vmul.f32 0.5, %v1028
    %v1030 = vsub.f32 1.5, %v1029
    %v1031 = vmul.f32 %v1026, %v1030
    %vm1032 = vweird.f32 %v882
    %vm1033 = vweird.f32 %v1026
    %vm1034 = vmor %vm1032, %vm1033
    %v1035 = vsel %vm1034, %v1026, %v1031
    %v1036 = vrsqrt.pop %v884
    %v1037 = vmul.f32 %v1036, %v884
    %v1038 = vmul.f32 %v1037, %v1036
    %v1039 = vmul.f32 0.5, %v1038
    %v1040 = vsub.f32 1.5, %v1039
    %v1041 = vmul.f32 %v1036, %v1040
    %vm1042 = vweird.f32 %v884
    %vm1043 = vweird.f32 %v1036
    %vm1044 = vmor %vm1042, %vm1043
    %v1045 = vsel %vm1044, %v1036, %v1041
    %v1046 = vmul.f32 %v797, %v895
    %v1047 = vmul.f32 %v798, %v905
    %v1048 = vmul.f32 %v799, %v915
    %v1049 = vmul.f32 %v800, %v925
    %v1050 = vmul.f32 %v801, %v935
    %v1051 = vmul.f32 %v802, %v945
    %v1052 = vmul.f32 %v803, %v955
    %v1053 = vmul.f32 %v804, %v965
    %v1054 = vmul.f32 %v805, %v975
    %v1055 = vmul.f32 %v806, %v985
    %v1056 = vmul.f32 %v807, %v995
    %v1057 = vmul.f32 %v808, %v1005
    %v1058 = vmul.f32 %v809, %v1015
    %v1059 = vmul.f32 %v810, %v1025
    %v1060 = vmul.f32 %v811, %v1035
    %v1061 = vmul.f32 %v812, %v1045
    %v1062 = vperm.slane %v110, 4
    %v1063 = vmul.f32 %v1046, %v1062
    %v1064 = vmul.f32 %v1047, %v1062
    %v1065 = vmul.f32 %v1048, %v1062
    %v1066 = vmul.f32 %v1049, %v1062
    %v1067 = vmul.f32 %v1050, %v1062
    %v1068 = vmul.f32 %v1051, %v1062
    %v1069 = vmul.f32 %v1052, %v1062
    %v1070 = vmul.f32 %v1053, %v1062
    %v1071 = vmul.f32 %v1054, %v1062
    %v1072 = vmul.f32 %v1055, %v1062
    %v1073 = vmul.f32 %v1056, %v1062
    %v1074 = vmul.f32 %v1057, %v1062
    %v1075 = vmul.f32 %v1058, %v1062
    %v1076 = vmul.f32 %v1059, %v1062
    %v1077 = vmul.f32 %v1060, %v1062
    %v1078 = vmul.f32 %v1061, %v1062
    %v1079 = vperm.slane %v110, 5
    %v1080 = vadd.f32 %v1063, %v1079
    %v1081 = vadd.f32 %v1064, %v1079
    %v1082 = vadd.f32 %v1065, %v1079
    %v1083 = vadd.f32 %v1066, %v1079
    %v1084 = vadd.f32 %v1067, %v1079
    %v1085 = vadd.f32 %v1068, %v1079
    %v1086 = vadd.f32 %v1069, %v1079
    %v1087 = vadd.f32 %v1070, %v1079
    %v1088 = vadd.f32 %v1071, %v1079
    %v1089 = vadd.f32 %v1072, %v1079
    %v1090 = vadd.f32 %v1073, %v1079
    %v1091 = vadd.f32 %v1074, %v1079
    %v1092 = vadd.f32 %v1075, %v1079
    %v1093 = vadd.f32 %v1076, %v1079
    %v1094 = vadd.f32 %v1077, %v1079
    %v1095 = vadd.f32 %v1078, %v1079
    %v1096 = vadd.f32 %v1080, %v602
    %v1097 = vadd.f32 %v1081, %v603
    %v1098 = vadd.f32 %v1082, %v604
    %v1099 = vadd.f32 %v1083, %v605
    %v1100 = vadd.f32 %v1084, %v606
    %v1101 = vadd.f32 %v1085, %v607
    %v1102 = vadd.f32 %v1086, %v608
    %v1103 = vadd.f32 %v1087, %v609
    %v1104 = vadd.f32 %v1088, %v610
    %v1105 = vadd.f32 %v1089, %v611
    %v1106 = vadd.f32 %v1090, %v612
    %v1107 = vadd.f32 %v1091, %v613
    %v1108 = vadd.f32 %v1092, %v614
    %v1109 = vadd.f32 %v1093, %v615
    %v1110 = vadd.f32 %v1094, %v616
    %v1111 = vadd.f32 %v1095, %v617
    %v1112 = vpack.c.bf16 %v1097, %v1096
    %v1113 = vpack.c.bf16 %v1099, %v1098
    %v1114 = vpack.c.bf16 %v1101, %v1100
    %v1115 = vpack.c.bf16 %v1103, %v1102
    %v1116 = vpack.c.bf16 %v1105, %v1104
    %v1117 = vpack.c.bf16 %v1107, %v1106
    %v1118 = vpack.c.bf16 %v1109, %v1108
    %v1119 = vpack.c.bf16 %v1111, %v1110
    %v1120 = vperm.slane %v110, 6
    %v1137 = vunpack.c.l.b16 %v77
    %v1138 = vunpack.c.l.b16 %v78
    %v1139 = vunpack.c.l.b16 %v79
    %v1140 = vunpack.c.l.b16 %v80
    %v1141 = vunpack.c.l.b16 %v81
    %v1142 = vunpack.c.l.b16 %v82
    %v1143 = vunpack.c.l.b16 %v83
    %v1144 = vunpack.c.l.b16 %v84
    %v1145 = vunpack.c.l.b16 %v85
    %v1146 = vunpack.c.l.b16 %v86
    %v1147 = vunpack.c.l.b16 %v87
    %v1148 = vunpack.c.l.b16 %v88
    %v1149 = vunpack.c.l.b16 %v89
    %v1150 = vunpack.c.l.b16 %v90
    %v1151 = vunpack.c.l.b16 %v91
    %v1152 = vunpack.c.l.b16 %v92
    %v1153 = vpack.c.b16 %v1138, %v1137
    %v1154 = vpack.c.b16 %v1140, %v1139
    %v1155 = vpack.c.b16 %v1142, %v1141
    %v1156 = vpack.c.b16 %v1144, %v1143
    %v1157 = vpack.c.b16 %v1146, %v1145
    %v1158 = vpack.c.b16 %v1148, %v1147
    %v1159 = vpack.c.b16 %v1150, %v1149
    %v1160 = vpack.c.b16 %v1152, %v1151
    %1169 = vmatpush.bf16.msra.mxu0 %v1160
    %1170 = vmatpush.bf16.msra.mxu0 %v1159
    %1171 = vmatpush.bf16.msra.mxu0 %v1158
    %1172 = vmatpush.bf16.msra.mxu0 %v1157
    %1173 = vmatpush.bf16.msra.mxu0 %v1156
    %1174 = vmatpush.bf16.msra.mxu0 %v1155
    %1175 = vmatpush.bf16.msra.mxu0 %v1154
    %1176 = vmatpush.bf16.msra.mxu0 %v1153
    %1177 = vmatmul.bf16.gmra.mxu0 %v1112
    %v1178 = vpop.f32.mrf.mxu0
    %v1179 = vadd.f32 %v1120, %v1178
    %v1180 = vpop.f32.mrf.mxu0
    %v1181 = vadd.f32 %v1120, %v1180
    %1182 = vmatmul.bf16.gmra.mxu0 %v1113
    %v1183 = vpop.f32.mrf.mxu0
    %v1184 = vadd.f32 %v1120, %v1183
    %v1185 = vpop.f32.mrf.mxu0
    %v1186 = vadd.f32 %v1120, %v1185
    %1187 = vmatmul.bf16.gmra.mxu0 %v1114
    %v1188 = vpop.f32.mrf.mxu0
    %v1189 = vadd.f32 %v1120, %v1188
    %v1190 = vpop.f32.mrf.mxu0
    %v1191 = vadd.f32 %v1120, %v1190
    %1192 = vmatmul.bf16.gmra.mxu0 %v1115
    %v1193 = vpop.f32.mrf.mxu0
    %v1194 = vadd.f32 %v1120, %v1193
    %v1195 = vpop.f32.mrf.mxu0
    %v1196 = vadd.f32 %v1120, %v1195
    %1197 = vmatmul.bf16.gmra.mxu0 %v1116
    %v1198 = vpop.f32.mrf.mxu0
    %v1199 = vadd.f32 %v1120, %v1198
    %v1200 = vpop.f32.mrf.mxu0
    %v1201 = vadd.f32 %v1120, %v1200
    %1202 = vmatmul.bf16.gmra.mxu0 %v1117
    %v1203 = vpop.f32.mrf.mxu0
    %v1204 = vadd.f32 %v1120, %v1203
    %v1205 = vpop.f32.mrf.mxu0
    %v1206 = vadd.f32 %v1120, %v1205
    %1207 = vmatmul.bf16.gmra.mxu0 %v1118
    %v1208 = vpop.f32.mrf.mxu0
    %v1209 = vadd.f32 %v1120, %v1208
    %v1210 = vpop.f32.mrf.mxu0
    %v1211 = vadd.f32 %v1120, %v1210
    %1212 = vmatmul.bf16.gmra.mxu0 %v1119
    %v1213 = vpop.f32.mrf.mxu0
    %v1214 = vadd.f32 %v1120, %v1213
    %v1215 = vpop.f32.mrf.mxu0
    %v1216 = vadd.f32 %v1120, %v1215
    %1217 = vdwg.mxu0
    %v1218 = vadd.f32 %v1179, %v1199
    %v1219 = vadd.f32 %v1181, %v1201
    %v1220 = vadd.f32 %v1184, %v1204
    %v1221 = vadd.f32 %v1186, %v1206
    %v1222 = vadd.f32 %v1189, %v1209
    %v1223 = vadd.f32 %v1191, %v1211
    %v1224 = vadd.f32 %v1194, %v1214
    %v1225 = vadd.f32 %v1196, %v1216
    %1226 = vst [vmem:[#allocation7] sm:$0xff] %v1218
    %1227 = vst [vmem:[#allocation7 + $0x8] sm:$0xff] %v1219
    %1228 = vst [vmem:[#allocation7 + $0x10] sm:$0xff] %v1220
    %1229 = vst [vmem:[#allocation7 + $0x18] sm:$0xff] %v1221
    %1230 = vst [vmem:[#allocation7 + $0x20] sm:$0xff] %v1222
    %1231 = vst [vmem:[#allocation7 + $0x28] sm:$0xff] %v1223
    %1232 = vst [vmem:[#allocation7 + $0x30] sm:$0xff] %v1224
    %1233 = vst [vmem:[#allocation7 + $0x38] sm:$0xff] %v1225
    // Predicated region
    $region18: #{tpu_custom_call.1} parent=1 // pred_check
      _
    $region19: #{tpu_custom_call.1} parent=1 // pred_check_branch
      %1235 = sbr.rel (0) target = $region21
    $region20: #{tpu_custom_call.1} parent=1 // pred_region
      %1237 = vsyncadd [#allocation4], 0
      %s1238 = sshll.u32 [#allocation7], 4
      %s1239 = int_to_ptr.vmem [resolvable:$true] %s1238
      %s1240 = sshll.u32 %s2, 4
      %s1241 = int_to_ptr.hbm [resolvable:$true] %s1240
      %1246 = dma.vmem_to_hbm [thread:$0]  %s1239, 1024, %s1241, [#allocation4], 128, 128, 8
    $region21: #{tpu_custom_call.1} parent=1 // pred_fallthru
      _
    // Predicated region
    $region22: #{tpu_custom_call.1} parent=1 // pred_check
      _
    $region23: #{tpu_custom_call.1} parent=1 // pred_check_branch
      %1248 = sbr.rel (0) target = $region25
    $region24: #{tpu_custom_call.1} parent=1 // pred_region
      %1250 = dma.done [#allocation4], 1024
    $region25: #{tpu_custom_call.1} parent=1 // pred_fallthru
      _
    %1251 = vsyncpa [#allocation3], 1
    %1252 = vsyncpa [#allocation6], 1
    %1253 = vsyncpa [#allocation4], 1

</llo_original>
